<compile_context>
chip_gen: v7x
topology: tpu7x:2x2x1
jax: 0.10.0
libtpu: 0.0.40
codegen_flags: <defaults>
</compile_context>

<pallas_src>
import functools

import jax
import jax.numpy as jnp
from jax.experimental import pallas as pl
from jax.experimental.pallas import tpu as pltpu

_LANE = 128
_NEG_BIG = -1e30  # finite "-inf" for padded class columns (avoids inf-inf NaNs)


def _round_up(x, m):
    return ((x + m - 1) // m) * m


def _mlp_classifier_kernel(num_class, h_col,
                           x_ref, w1_ref, w2_ref, y_ref,
                           logits_ref, scalars_ref):
    """MLP head: Linear -> ReLU -> Linear -> log_softmax -> NLL loss / accuracy.

    Padded shapes: x (B, Dp) f32 with column D == 1.0 (folded b1),
    w1 (Dp, Hp) bf16 with b1 in row D, w2 (Hp, Cp) bf16 with b2 in row H,
    y (B, 1) int32.  Outputs: logits (B, Cp) f32 VMEM, scalars (2,) f32 SMEM
    holding [loss, acc].
    """
    batch = x_ref.shape[0]

    # ---- Linear 1 (+ folded b1) + ReLU: bf16 MXU operands, f32 accumulation ----
    x_bf16 = x_ref[...].astype(jnp.bfloat16)
    h1 = jnp.dot(x_bf16, w1_ref[...], preferred_element_type=jnp.float32)   # (B, Hp)
    h1 = jnp.maximum(h1, 0.0)

    # Drive the folded b2 row of w2p: set hidden column `h_col` (== H, a padded
    # zero column after ReLU) to 1.0.  Cheap VPU select, no relayout.
    h_iota = jax.lax.broadcasted_iota(jnp.int32, h1.shape, 1)
    h1 = jnp.where(h_iota == h_col, 1.0, h1)

    # ---- Linear 2 (+ folded b2) ----
    z = jnp.dot(h1.astype(jnp.bfloat16), w2_ref[...],
                preferred_element_type=jnp.float32)                          # (B, Cp)

    c_pad = z.shape[1]
    col = jax.lax.broadcasted_iota(jnp.int32, z.shape, 1)                    # (B, Cp)
    z = jnp.where(col < num_class, z, _NEG_BIG)                              # mask padded classes

    # ---- log_softmax over classes (f32, numerically stable) ----
    z_max = jnp.max(z, axis=1, keepdims=True)
    z_shift = z - z_max
    lse = jnp.log(jnp.sum(jnp.exp(z_shift), axis=1, keepdims=True))
    logp = z_shift - lse                                                     # (B, Cp)
    logits_ref[...] = logp                                                   # lane-dense store

    labels = y_ref[...]                                                      # (B, 1) int32

    # ---- NLL loss (mean reduction): one-hot rebuilt from the class iota ----
    onehot = col == labels                                                   # (B, Cp) bool
    scalars_ref[0] = -jnp.sum(jnp.where(onehot, logp, 0.0)) / batch

    # ---- accuracy: argmax over valid classes, reusing z / z_max ----
    pred = jnp.min(jnp.where(z == z_max, col, c_pad), axis=1, keepdims=True)  # (B, 1)
    scalars_ref[1] = jnp.sum((pred == labels).astype(jnp.float32)) / batch


def pad_classifier_params(w1, b1, w2, b2):
    """Fold biases into lane-dense, MXU-ready bf16 weight matrices (done ONCE).

    w1p[(D+1..), H..] and w2p[(H+1..), C..] are zero; row D of w1p holds b1 and
    row H of w2p holds b2 (driven by a 1.0 input/hidden column).
    """
    D, H = w1.shape
    C = w2.shape[1]
    d_pad = _round_up(D + 1, _LANE)
    h_pad = _round_up(H + 1, _LANE)
    c_pad = _round_up(C, _LANE)

    w1p = jnp.zeros((d_pad, h_pad), jnp.bfloat16)
    w1p = w1p.at[:D, :H].set(w1.astype(jnp.bfloat16))
    w1p = w1p.at[D, :H].set(b1.reshape(H).astype(jnp.bfloat16))

    w2p = jnp.zeros((h_pad, c_pad), jnp.bfloat16)
    w2p = w2p.at[:H, :C].set(w2.astype(jnp.bfloat16))
    w2p = w2p.at[H, :C].set(b2.reshape(C).astype(jnp.bfloat16))
    return w1p, w2p


def make_classifier_forward(in_dim, hidden, num_class):
    """Build a jitted Classifier.forward-equivalent for fixed layer sizes."""
    d_pad = _round_up(in_dim + 1, _LANE)
    h_pad = _round_up(hidden + 1, _LANE)
    c_pad = _round_up(num_class, _LANE)

    kernel = functools.partial(_mlp_classifier_kernel, num_class, hidden)
    vmem = pl.BlockSpec(memory_space=pltpu.MemorySpace.VMEM)
    smem = pl.BlockSpec(memory_space=pltpu.MemorySpace.SMEM)

    def _mlp_head(embed, labels, w1p, w2p):
        B = embed.shape[0]
        # Lane-dense (B, Dp) LHS; column `in_dim` is the folded-bias ones column.
        xp = (jnp.zeros((B, d_pad), jnp.float32)
              .at[:, :in_dim].set(embed)
              .at[:, in_dim].set(1.0))
        y2d = labels.astype(jnp.int32).reshape(B, 1)

        cost = pl.CostEstimate(
            flops=2 * B * (d_pad * h_pad + h_pad * c_pad),
            transcendentals=B * c_pad + B,
            bytes_accessed=(B * d_pad * 4 + d_pad * h_pad * 2 + h_pad * c_pad * 2
                            + B * 4 + B * c_pad * 4 + 8),
        )

        # Single-shot launch (no grid): toy shapes, per-grid-step overhead
        # would dominate.
        logits_pad, scalars = pl.pallas_call(
            kernel,
            out_shape=(
                jax.ShapeDtypeStruct((B, c_pad), jnp.float32),
                jax.ShapeDtypeStruct((2,), jnp.float32),
            ),
            in_specs=[vmem, vmem, vmem, vmem],
            out_specs=(vmem, smem),
            cost_estimate=cost,
        )(xp, w1p, w2p, y2d)

        return logits_pad[:, :num_class], scalars[0], scalars[1]

    @jax.jit
    def forward(node_feat, labels, embed, ret_s1, ret_s2, w1p, w2p):
        """Mirrors Classifier.forward: build MI labels, run the MLP head."""
        N = node_feat.shape[0]
        milbl_s1 = jnp.concatenate([jnp.ones((N,), jnp.float32),
                                    jnp.zeros((N,), jnp.float32)], axis=0)
        half_s2 = ret_s2.shape[0] // 2
        milbl_s2 = jnp.concatenate([jnp.ones((half_s2,), jnp.float32),
                                    jnp.zeros((half_s2,), jnp.float32)], axis=0)
        logits, cls_loss, acc = _mlp_head(embed, labels, w1p, w2p)
        return logits, cls_loss, acc, ret_s1, milbl_s1, ret_s2, milbl_s2

    return forward


def _reference_head(embed, labels, w1, b1, w2, b2):
    """Pure-f32 jnp reference for the MLP head (tolerance check only)."""
    h = jnp.maximum(embed @ w1 + b1, 0.0)
    z = h @ w2 + b2
    logp = jax.nn.log_softmax(z, axis=-1)
    loss = -jnp.mean(logp[jnp.arange(embed.shape[0]), labels])
    acc = jnp.mean((jnp.argmax(logp, axis=1) == labels).astype(jnp.float32))
    return logp, loss, acc


if __name__ == "__main__":
    # ---- small synthetic configuration (cmd_args stand-ins) ----
    num_graphs = 8        # batch of graphs
    total_nodes = 32      # N: total nodes across the batch
    feat_dim = 8          # node feature dim (feat_dim + attr_dim)
    out_dim = 32          # GXN output dim == MLP input_size
    hidden = 32           # MLP hidden size
    num_class = 4
    pooled_nodes = 16     # nodes after the GXN pooling stage (for ret_s2)

    key = jax.random.PRNGKey(0)
    k_feat, k_lbl, k_emb, k_s1, k_s2, k_w1, k_b1, k_w2, k_b2 = jax.random.split(key, 9)

    # PrepareFeatureLabel stand-ins (node features + graph labels)
    node_feat = jax.random.normal(k_feat, (total_nodes, feat_dim), jnp.float32)
    labels = jax.random.randint(k_lbl, (num_graphs,), 0, num_class, jnp.int32)

    # TODO(synk): GXN s2v outputs synthesized deterministically (encoder code not given).
    embed = jax.random.normal(k_emb, (num_graphs, out_dim), jnp.float32)
    ret_s1 = jax.random.normal(k_s1, (2 * total_nodes,), jnp.float32)
    ret_s2 = jax.random.normal(k_s2, (2 * pooled_nodes,), jnp.float32)

    # nn.Linear-style deterministic init: U(-1/sqrt(fan_in), 1/sqrt(fan_in))
    b1_bound = 1.0 / (out_dim ** 0.5)
    b2_bound = 1.0 / (hidden ** 0.5)
    w1 = jax.random.uniform(k_w1, (out_dim, hidden), jnp.float32, -b1_bound, b1_bound)
    b1 = jax.random.uniform(k_b1, (1, hidden), jnp.float32, -b1_bound, b1_bound)
    w2 = jax.random.uniform(k_w2, (hidden, num_class), jnp.float32, -b2_bound, b2_bound)
    b2 = jax.random.uniform(k_b2, (1, num_class), jnp.float32, -b2_bound, b2_bound)

    # Hoisted out of the hot path: pad / fold biases ONCE when params are made.
    w1p, w2p = pad_classifier_params(w1, b1, w2, b2)
    forward = make_classifier_forward(out_dim, hidden, num_class)

    outs = forward(node_feat, labels, embed, ret_s1, ret_s2, w1p, w2p)
    outs = jax.block_until_ready(outs)

    logits, cls_loss, acc, r1, m1, r2, m2 = outs
    assert logits.shape == (num_graphs, num_class)
    assert m1.shape == (2 * total_nodes,)
    assert m2.shape == (2 * pooled_nodes,)
    # log_softmax rows must sum to 1 in prob space
    assert bool(jnp.allclose(jnp.sum(jnp.exp(logits), axis=1), 1.0, atol=1e-4))
    assert bool(jnp.isfinite(cls_loss)) and 0.0 <= float(acc) <= 1.0

    # Mixed-precision check vs. the pure-f32 reference (bf16 MXU operands ->
    # loose tolerance).
    ref_logits, ref_loss, ref_acc = _reference_head(embed, labels, w1, b1, w2, b2)
    assert bool(jnp.allclose(logits, ref_logits, atol=5e-2))
    assert abs(float(cls_loss) - float(ref_loss)) < 5e-2
    assert abs(float(acc) - float(ref_acc)) < 1e-6

    print("KERNEL_OK")
</pallas_src>

<mosaic_0001>
module attributes {stable_mosaic.version = 11 : i64} {
  func.func @_mlp_classifier_kernel(%arg0: memref<8x128xf32, #tpu.memory_space<vmem>>, %arg1: memref<128x128xbf16, #tpu.memory_space<vmem>>, %arg2: memref<128x128xbf16, #tpu.memory_space<vmem>>, %arg3: memref<8x1xi32, #tpu.memory_space<vmem>>, %arg4: memref<8x128xf32, #tpu.memory_space<vmem>>, %arg5: memref<2xf32, #tpu.memory_space<smem>>) attributes {dimension_semantics = [], scalar_prefetch = 0 : i64, scratch_operands = 0 : i64, tpu.core_type = #tpu.core_type<tc>} {
    %c0 = arith.constant 0 : index
    %c0_0 = arith.constant 0 : index
    %0 = vector.load %arg0[%c0, %c0_0] : memref<8x128xf32, #tpu.memory_space<vmem>>, vector<8x128xf32>
    %1 = arith.truncf %0 : vector<8x128xf32> to vector<8x128xbf16>
    %c0_1 = arith.constant 0 : index
    %c0_2 = arith.constant 0 : index
    %2 = vector.load %arg1[%c0_1, %c0_2] : memref<128x128xbf16, #tpu.memory_space<vmem>>, vector<128x128xbf16>
    %cst = arith.constant dense<0.000000e+00> : vector<8x128xf32>
    %3 = tpu.matmul %1, %2, %cst {dimension_numbers = #tpu.dot_dimension_numbers<[1], [0], [0], [1], [0, 0, 1, 1], [], []>} : vector<8x128xbf16>, vector<128x128xbf16>, vector<8x128xf32> -> vector<8x128xf32>
    %cst_3 = arith.constant 0.000000e+00 : f32
    %4 = vector.broadcast %cst_3 : f32 to vector<8x128xf32>
    %5 = arith.maximumf %3, %4 : vector<8x128xf32>
    %6 = tpu.iota {dimensions = array<i32: 1>} : vector<8x128xi32>
    %c32_i32 = arith.constant 32 : i32
    %7 = vector.broadcast %c32_i32 : i32 to vector<8x128xi32>
    %8 = arith.cmpi eq, %6, %7 : vector<8x128xi32>
    %cst_4 = arith.constant 1.000000e+00 : f32
    %9 = vector.broadcast %cst_4 : f32 to vector<8x128xf32>
    %10 = arith.select %8, %9, %5 : vector<8x128xi1>, vector<8x128xf32>
    %11 = arith.truncf %10 : vector<8x128xf32> to vector<8x128xbf16>
    %c0_5 = arith.constant 0 : index
    %c0_6 = arith.constant 0 : index
    %12 = vector.load %arg2[%c0_5, %c0_6] : memref<128x128xbf16, #tpu.memory_space<vmem>>, vector<128x128xbf16>
    %cst_7 = arith.constant dense<0.000000e+00> : vector<8x128xf32>
    %13 = tpu.matmul %11, %12, %cst_7 {dimension_numbers = #tpu.dot_dimension_numbers<[1], [0], [0], [1], [0, 0, 1, 1], [], []>} : vector<8x128xbf16>, vector<128x128xbf16>, vector<8x128xf32> -> vector<8x128xf32>
    %14 = tpu.iota {dimensions = array<i32: 1>} : vector<8x128xi32>
    %c4_i32 = arith.constant 4 : i32
    %15 = vector.broadcast %c4_i32 : i32 to vector<8x128xi32>
    %16 = arith.cmpi slt, %14, %15 : vector<8x128xi32>
    %cst_8 = arith.constant -1.000000e+30 : f32
    %17 = vector.broadcast %cst_8 : f32 to vector<8x128xf32>
    %18 = arith.select %16, %13, %17 : vector<8x128xi1>, vector<8x128xf32>
    %cst_9 = arith.constant dense<0xFF800000> : vector<8xf32>
    %19 = vector.multi_reduction <maximumf>, %18, %cst_9 [1] : vector<8x128xf32> to vector<8xf32>
    %20 = vector.shape_cast %19 : vector<8xf32> to vector<8x1xf32>
    %21 = vector.broadcast %20 : vector<8x1xf32> to vector<8x128xf32>
    %22 = arith.subf %18, %21 : vector<8x128xf32>
    %23 = math.exp %22 : vector<8x128xf32>
    %cst_10 = arith.constant dense<0.000000e+00> : vector<8xf32>
    %24 = vector.multi_reduction <add>, %23, %cst_10 [1] : vector<8x128xf32> to vector<8xf32>
    %25 = vector.shape_cast %24 : vector<8xf32> to vector<8x1xf32>
    %26 = math.log %25 : vector<8x1xf32>
    %27 = vector.broadcast %26 : vector<8x1xf32> to vector<8x128xf32>
    %28 = arith.subf %22, %27 : vector<8x128xf32>
    %c0_11 = arith.constant 0 : index
    %c0_12 = arith.constant 0 : index
    %29 = vector.load %arg4[%c0_11, %c0_12] : memref<8x128xf32, #tpu.memory_space<vmem>>, vector<8x128xf32>
    tpu.vector_store %arg4[%c0_11, %c0_12], %28 {strides = array<i32>} : memref<8x128xf32, #tpu.memory_space<vmem>>, vector<8x128xf32>,
    %c0_13 = arith.constant 0 : index
    %c0_14 = arith.constant 0 : index
    %30 = vector.load %arg3[%c0_13, %c0_14] : memref<8x1xi32, #tpu.memory_space<vmem>>, vector<8x1xi32>
    %31 = vector.broadcast %30 : vector<8x1xi32> to vector<8x128xi32>
    %32 = arith.cmpi eq, %14, %31 : vector<8x128xi32>
    %cst_15 = arith.constant 0.000000e+00 : f32
    %33 = vector.broadcast %cst_15 : f32 to vector<8x128xf32>
    %34 = arith.select %32, %28, %33 : vector<8x128xi1>, vector<8x128xf32>
    %35 = vector.shape_cast %34 : vector<8x128xf32> to vector<1x8x128xf32>
    %cst_16 = arith.constant dense<0.000000e+00> : vector<1xf32>
    %36 = vector.multi_reduction <add>, %35, %cst_16 [1, 2] : vector<1x8x128xf32> to vector<1xf32>
    %37 = vector.shape_cast %36 : vector<1xf32> to vector<1x1x1xf32>
    %38 = vector.extract %37[0, 0, 0] : f32 from vector<1x1x1xf32>
    %cst_17 = arith.constant 0.000000e+00 : f32
    %39 = arith.subf %cst_17, %38 : f32
    %cst_18 = arith.constant 8.000000e+00 : f32
    %40 = arith.divf %39, %cst_18 : f32
    %c0_19 = arith.constant 0 : index
    %41 = memref.load %arg5[%c0_19] : memref<2xf32, #tpu.memory_space<smem>>
    memref.store %40, %arg5[%c0_19] : memref<2xf32, #tpu.memory_space<smem>>
    %42 = vector.broadcast %20 : vector<8x1xf32> to vector<8x128xf32>
    %43 = arith.cmpf oeq, %18, %42 : vector<8x128xf32>
    %c128_i32 = arith.constant 128 : i32
    %44 = vector.broadcast %c128_i32 : i32 to vector<8x128xi32>
    %45 = arith.select %43, %14, %44 : vector<8x128xi1>, vector<8x128xi32>
    %cst_20 = arith.constant dense<2147483647> : vector<8xi32>
    %46 = vector.multi_reduction <minsi>, %45, %cst_20 [1] : vector<8x128xi32> to vector<8xi32>
    %47 = vector.shape_cast %46 : vector<8xi32> to vector<8x1xi32>
    %48 = arith.cmpi eq, %47, %30 : vector<8x1xi32>
    %49 = arith.extui %48 : vector<8x1xi1> to vector<8x1xi32>
    %50 = arith.sitofp %49 : vector<8x1xi32> to vector<8x1xf32>
    %51 = vector.shape_cast %50 : vector<8x1xf32> to vector<1x8x1xf32>
    %cst_21 = arith.constant dense<0.000000e+00> : vector<1xf32>
    %52 = vector.multi_reduction <add>, %51, %cst_21 [1, 2] : vector<1x8x1xf32> to vector<1xf32>
    %53 = vector.shape_cast %52 : vector<1xf32> to vector<1x1x1xf32>
    %54 = vector.extract %53[0, 0, 0] : f32 from vector<1x1x1xf32>
    %cst_22 = arith.constant 8.000000e+00 : f32
    %55 = arith.divf %54, %cst_22 : f32
    %c1 = arith.constant 1 : index
    %56 = memref.load %arg5[%c1] : memref<2xf32, #tpu.memory_space<smem>>
    memref.store %55, %arg5[%c1] : memref<2xf32, #tpu.memory_space<smem>>
    return
  }
}

</mosaic_0001>

<llo_original>
// kernel: forward.1
$region0: #{forward.1}
  #allocation0 [shape = 'u32[]', space=smem, size = 0x4, offset = 0x4, fixed_abs, tag = 'smem constant byte address 0x4 - core index']
  #allocation1 [shape = 'u32[144,128]{1,0:T(1,128)}', space=vmem, size = 0x12000, scoped, tag = 'internal scratch']
  %s0 = inlined_call_operand.vmem [shape: f32[8,128], index: 0, kind: input, shape index: {}]
  %s1 = inlined_call_operand.vmem [shape: bf16[128,128], index: 1, kind: input, shape index: {}]
  %s2 = inlined_call_operand.hbm [shape: bf16[128,128], index: 2, kind: input, shape index: {}]
  %s3 = inlined_call_operand.vmem [shape: s32[8,1], index: 3, kind: input, shape index: {}]
  %s4 = inlined_call_operand.vmem [shape: f32[8,128], index: 4, kind: output, shape index: {0}]
  %s5 = inlined_call_operand.vmem [shape: f32[2], index: 5, kind: output, shape index: {1}]
  %6 = xla_tuple %s4, %s5
  %s7 = sld [smem:[#allocation0]]
  $region38: #{forward.1} parent=0
    _
  %s9 = ssub.s32 1, %s7
  %s10 = scalar_select 0, %s9, %s7
  $region1: #{forward.1} parent=0
    #allocation2 [shape = 'u8[32768]{0}', space=vmem, size = 0x8000, scoped, tag = 'input window, operand 2, single buffered']
    #allocation3 [shape = 's32[1]{0}', space=sflag, size = 0x4, scoped, tag = 'scoped memory for forward.1']
    #allocation4 [shape = 's32[1]{0}', space=sflag, size = 0x4, scoped, tag = 'scoped memory for forward.1']
    #allocation5 [shape = 'u8[512]{0}', space=smem, size = 0x200, scoped, tag = 'output window, operand 1, single buffered']
    %11 = vsyncpa [#allocation3], 0
    %12 = vsyncpa [#allocation4], 0
    // Predicated region
    $region2: #{forward.1} parent=1 // pred_check
      _
    $region3: #{forward.1} parent=1 // pred_check_branch
      %14 = sbr.rel (0) target = $region5
    $region4: #{forward.1} parent=1 // pred_region
      _
    $region5: #{forward.1} parent=1 // pred_fallthru
      _
    // Predicated region
    $region6: #{forward.1} parent=1 // pred_check
      _
    $region7: #{forward.1} parent=1 // pred_check_branch
      %16 = sbr.rel (0) target = $region9
    $region8: #{forward.1} parent=1 // pred_region
      _
    $region9: #{forward.1} parent=1 // pred_fallthru
      _
    // Predicated region
    $region10: #{forward.1} parent=1 // pred_check
      _
    $region11: #{forward.1} parent=1 // pred_check_branch
      %18 = sbr.rel (0) target = $region13
    $region12: #{forward.1} parent=1 // pred_region
      %s20 = ssub.s32 1024, 1024
      %21 = vsyncadd [#allocation3], %s20
      %s22 = sshll.u32 [#allocation2], 4
      %s23 = int_to_ptr.vmem [resolvable:$true] %s22
      %28 = dma.hbm_to_vmem [thread:$0]  %s2, 1024, %s23, [#allocation3], 64, 64, 4
    $region13: #{forward.1} parent=1 // pred_fallthru
      _
    // Predicated region
    $region14: #{forward.1} parent=1 // pred_check
      _
    $region15: #{forward.1} parent=1 // pred_check_branch
      %30 = sbr.rel (0) target = $region17
    $region16: #{forward.1} parent=1 // pred_region
      _
    $region17: #{forward.1} parent=1 // pred_fallthru
      _
    // Predicated region
    $region18: #{forward.1} parent=1 // pred_check
      _
    $region19: #{forward.1} parent=1 // pred_check_branch
      %32 = sbr.rel (0) target = $region21
    $region20: #{forward.1} parent=1 // pred_region
      %33 = dma.done [#allocation3], 1024
    $region21: #{forward.1} parent=1 // pred_fallthru
      _
    %v35 = vld [vmem:[%s0] sm:$0xff]
    %v36 = vpack.c.bf16 %v35, %v35
    %v37 = vld [vmem:[%s1] sm:$0xf]
    %v38 = vld [vmem:[%s1 + $0x4] sm:$0xf]
    %v39 = vld [vmem:[%s1 + $0x8] sm:$0xf]
    %v40 = vld [vmem:[%s1 + $0xc] sm:$0xf]
    %v41 = vld [vmem:[%s1 + $0x10] sm:$0xf]
    %v42 = vld [vmem:[%s1 + $0x14] sm:$0xf]
    %v43 = vld [vmem:[%s1 + $0x18] sm:$0xf]
    %v44 = vld [vmem:[%s1 + $0x1c] sm:$0xf]
    %v45 = vld [vmem:[%s1 + $0x20] sm:$0xf]
    %v46 = vld [vmem:[%s1 + $0x24] sm:$0xf]
    %v47 = vld [vmem:[%s1 + $0x28] sm:$0xf]
    %v48 = vld [vmem:[%s1 + $0x2c] sm:$0xf]
    %v49 = vld [vmem:[%s1 + $0x30] sm:$0xf]
    %v50 = vld [vmem:[%s1 + $0x34] sm:$0xf]
    %v51 = vld [vmem:[%s1 + $0x38] sm:$0xf]
    %v52 = vld [vmem:[%s1 + $0x3c] sm:$0xf]
    %v69 = vunpack.c.l.b16 %v37
    %v70 = vunpack.c.l.b16 %v38
    %v71 = vunpack.c.l.b16 %v39
    %v72 = vunpack.c.l.b16 %v40
    %v73 = vunpack.c.l.b16 %v41
    %v74 = vunpack.c.l.b16 %v42
    %v75 = vunpack.c.l.b16 %v43
    %v76 = vunpack.c.l.b16 %v44
    %v77 = vunpack.c.l.b16 %v45
    %v78 = vunpack.c.l.b16 %v46
    %v79 = vunpack.c.l.b16 %v47
    %v80 = vunpack.c.l.b16 %v48
    %v81 = vunpack.c.l.b16 %v49
    %v82 = vunpack.c.l.b16 %v50
    %v83 = vunpack.c.l.b16 %v51
    %v84 = vunpack.c.l.b16 %v52
    %v85 = vpack.c.b16 %v70, %v69
    %v86 = vpack.c.b16 %v72, %v71
    %v87 = vpack.c.b16 %v74, %v73
    %v88 = vpack.c.b16 %v76, %v75
    %v89 = vpack.c.b16 %v78, %v77
    %v90 = vpack.c.b16 %v80, %v79
    %v91 = vpack.c.b16 %v82, %v81
    %v92 = vpack.c.b16 %v84, %v83
    %101 = vmatprep.subr.bf16.mxu0 0
    %102 = vmatpush1.bf16.msra.mxu0 %v85
    %103 = vmatprep.subr.bf16.mxu0 0
    %104 = vmatpush1.bf16.msra.mxu0 %v86
    %105 = vmatprep.subr.bf16.mxu0 0
    %106 = vmatpush1.bf16.msra.mxu0 %v87
    %107 = vmatprep.subr.bf16.mxu0 0
    %108 = vmatpush1.bf16.msra.mxu0 %v88
    %109 = vmatprep.subr.bf16.mxu0 0
    %110 = vmatpush1.bf16.msra.mxu0 %v89
    %111 = vmatprep.subr.bf16.mxu0 0
    %112 = vmatpush1.bf16.msra.mxu0 %v90
    %113 = vmatprep.subr.bf16.mxu0 0
    %114 = vmatpush1.bf16.msra.mxu0 %v91
    %115 = vmatprep.subr.bf16.mxu0 0
    %116 = vmatpush1.bf16.msra.mxu0 %v92
    %117 = vmatprep.subr.bf16.mxu0 0
    %118 = vmatpush1.bf16.msra.mxu0 0
    %119 = vmatprep.subr.bf16.mxu0 0
    %120 = vmatpush1.bf16.msra.mxu0 0
    %121 = vmatprep.subr.bf16.mxu0 0
    %122 = vmatpush1.bf16.msra.mxu0 0
    %123 = vmatprep.subr.bf16.mxu0 0
    %124 = vmatpush1.bf16.msra.mxu0 0
    %125 = vmatprep.subr.bf16.mxu0 0
    %126 = vmatpush1.bf16.msra.mxu0 0
    %127 = vmatprep.subr.bf16.mxu0 0
    %128 = vmatpush1.bf16.msra.mxu0 0
    %129 = vmatprep.subr.bf16.mxu0 0
    %130 = vmatpush1.bf16.msra.mxu0 0
    %131 = vmatprep.subr.bf16.mxu0 0
    %132 = vmatpush1.bf16.msra.mxu0 0
    %133 = vmatprep.mubr.bf16.mxu0 0
    %134 = vmatmul.mubr.bf16.gmra.mrb[0].mxu0 %v36
    %v135 = vpop.f32.mrb[0].mxu0
    %v136 = vadd.f32 0.0, %v135
    %v137 = vpop.f32.mrb[0].mxu0
    %v138 = vpop.f32.mrb[0].mxu0
    %v139 = vpop.f32.mrb[0].mxu0
    %140 = vdwg.mxu0
    %v141 = vmax.f32 %v136, 0.0
    %v142 = vlaneseq
    %v143 = vand.u32 %v142, 127
    %vm144 = vcmp.eq.s32.totalorder %v143, 32
    %v145 = vsel %vm144, 1.0, %v141
    %v146 = vpack.c.bf16 %v145, %v145
    %v147 = vld [vmem:[#allocation2] sm:$0xf]
    %v148 = vld [vmem:[#allocation2 + $0x4] sm:$0xf]
    %v149 = vld [vmem:[#allocation2 + $0x8] sm:$0xf]
    %v150 = vld [vmem:[#allocation2 + $0xc] sm:$0xf]
    %v151 = vld [vmem:[#allocation2 + $0x10] sm:$0xf]
    %v152 = vld [vmem:[#allocation2 + $0x14] sm:$0xf]
    %v153 = vld [vmem:[#allocation2 + $0x18] sm:$0xf]
    %v154 = vld [vmem:[#allocation2 + $0x1c] sm:$0xf]
    %v155 = vld [vmem:[#allocation2 + $0x20] sm:$0xf]
    %v156 = vld [vmem:[#allocation2 + $0x24] sm:$0xf]
    %v157 = vld [vmem:[#allocation2 + $0x28] sm:$0xf]
    %v158 = vld [vmem:[#allocation2 + $0x2c] sm:$0xf]
    %v159 = vld [vmem:[#allocation2 + $0x30] sm:$0xf]
    %v160 = vld [vmem:[#allocation2 + $0x34] sm:$0xf]
    %v161 = vld [vmem:[#allocation2 + $0x38] sm:$0xf]
    %v162 = vld [vmem:[#allocation2 + $0x3c] sm:$0xf]
    %v179 = vunpack.c.l.b16 %v147
    %v180 = vunpack.c.l.b16 %v148
    %v181 = vunpack.c.l.b16 %v149
    %v182 = vunpack.c.l.b16 %v150
    %v183 = vunpack.c.l.b16 %v151
    %v184 = vunpack.c.l.b16 %v152
    %v185 = vunpack.c.l.b16 %v153
    %v186 = vunpack.c.l.b16 %v154
    %v187 = vunpack.c.l.b16 %v155
    %v188 = vunpack.c.l.b16 %v156
    %v189 = vunpack.c.l.b16 %v157
    %v190 = vunpack.c.l.b16 %v158
    %v191 = vunpack.c.l.b16 %v159
    %v192 = vunpack.c.l.b16 %v160
    %v193 = vunpack.c.l.b16 %v161
    %v194 = vunpack.c.l.b16 %v162
    %v195 = vpack.c.b16 %v180, %v179
    %v196 = vpack.c.b16 %v182, %v181
    %v197 = vpack.c.b16 %v184, %v183
    %v198 = vpack.c.b16 %v186, %v185
    %v199 = vpack.c.b16 %v188, %v187
    %v200 = vpack.c.b16 %v190, %v189
    %v201 = vpack.c.b16 %v192, %v191
    %v202 = vpack.c.b16 %v194, %v193
    %211 = vmatprep.subr.bf16.mxu0 0
    %212 = vmatpush1.bf16.msra.mxu0 %v195
    %213 = vmatprep.subr.bf16.mxu0 0
    %214 = vmatpush1.bf16.msra.mxu0 %v196
    %215 = vmatprep.subr.bf16.mxu0 0
    %216 = vmatpush1.bf16.msra.mxu0 %v197
    %217 = vmatprep.subr.bf16.mxu0 0
    %218 = vmatpush1.bf16.msra.mxu0 %v198
    %219 = vmatprep.subr.bf16.mxu0 0
    %220 = vmatpush1.bf16.msra.mxu0 %v199
    %221 = vmatprep.subr.bf16.mxu0 0
    %222 = vmatpush1.bf16.msra.mxu0 %v200
    %223 = vmatprep.subr.bf16.mxu0 0
    %224 = vmatpush1.bf16.msra.mxu0 %v201
    %225 = vmatprep.subr.bf16.mxu0 0
    %226 = vmatpush1.bf16.msra.mxu0 %v202
    %227 = vmatprep.subr.bf16.mxu0 0
    %228 = vmatpush1.bf16.msra.mxu0 0
    %229 = vmatprep.subr.bf16.mxu0 0
    %230 = vmatpush1.bf16.msra.mxu0 0
    %231 = vmatprep.subr.bf16.mxu0 0
    %232 = vmatpush1.bf16.msra.mxu0 0
    %233 = vmatprep.subr.bf16.mxu0 0
    %234 = vmatpush1.bf16.msra.mxu0 0
    %235 = vmatprep.subr.bf16.mxu0 0
    %236 = vmatpush1.bf16.msra.mxu0 0
    %237 = vmatprep.subr.bf16.mxu0 0
    %238 = vmatpush1.bf16.msra.mxu0 0
    %239 = vmatprep.subr.bf16.mxu0 0
    %240 = vmatpush1.bf16.msra.mxu0 0
    %241 = vmatprep.subr.bf16.mxu0 0
    %242 = vmatpush1.bf16.msra.mxu0 0
    %243 = vmatprep.mubr.bf16.mxu0 0
    %244 = vmatmul.mubr.bf16.gmra.mrb[0].mxu0 %v146
    %v245 = vpop.f32.mrb[0].mxu0
    %v246 = vadd.f32 0.0, %v245
    %v247 = vpop.f32.mrb[0].mxu0
    %v248 = vpop.f32.mrb[0].mxu0
    %v249 = vpop.f32.mrb[0].mxu0
    %250 = vdwg.mxu0
    %vm251 = vcmp.lt.s32.totalorder %v143, 4
    %v252 = vsel %vm251, %v246, -1e+30
    %253 = vmax.xlane.f32.xlu0 %v252
    %v254 = vpop.xlane.xlu0 %253
    %v255 = vsub.f32 %v252, %v254
    %v256 = vmul.f32 %v255, 1.442695
    %v257 = vpow.pop %v256
    %258 = vadd.xlane.f32.xlu0 %v257
    %v259 = vpop.xlane.xlu0 %258
    %v260 = vlog2.pop %v259
    %v261 = vmul.f32 %v260, 0.6931472
    %v262 = vsub.f32 %v255, %v261
    %263 = vst [vmem:[%s4] sm:$0xff] %v262
    %v264 = vld [vmem:[%s3] sm:$0xff]
    %265 = vset.pattern.permute.xlu0 0
    %266 = vperm.xlu0 %265, %v264
    %v267 = vpop.permute.xlu0 %266
    %vm268 = vcmp.eq.s32.totalorder %v143, %v267
    %v269 = vsel %vm268, %v262, 0.0
    %270 = vadd.xlane.f32.xlu0 %v269
    %v271 = vpop.xlane.xlu0 %270
    %v272 = vrot.slane %v271, 4
    %v273 = vadd.f32 %v271, %v272
    %v274 = vrot.slane %v273, 2
    %v275 = vadd.f32 %v273, %v274
    %v276 = vrot.slane %v275, 1
    %v277 = vadd.f32 %v275, %v276
    %s278 = vtos %v277
    %s279 = ssub.f32 0.0, %s278
    %v280 = vrcp.pop 8.0
    %s281 = vtos %v280
    %s282 = smul.f32 %s279, %s281
    %s283 = scalar_lea.smem [#allocation5], 0
    %284 = sst [smem:[%s283]] %s282
    %vm285 = vcmp.eq.f32.partialorder %v252, %v254
    %v286 = vsel %vm285, %v143, 128
    %v287 = vand.u32 %v286, 65535
    %v288 = vshra.s32 %v286, 16
    %v289 = vcvt.s32.f32 %v287
    %v290 = vcvt.s32.f32 %v288
    %291 = vmin.xlane.f32.xlu0 %v290
    %v292 = vpop.xlane.xlu0 %291
    %vm293 = vcmp.eq.f32.partialorder %v290, %v292
    %v294 = vsel %vm293, %v289, inf
    %295 = vmin.xlane.f32.xlu0 %v294
    %v296 = vpop.xlane.xlu0 %295
    %v297 = vcvt.f32.s32 %v296
    %v298 = vcvt.f32.s32 %v292
    %v299 = vshll.u32 %v298, 16
    %v300 = vadd.s32 %v299, %v297
    %vm301 = vcmp.eq.s32.totalorder %v300, %v264
    %v302 = vsel %vm301, 1, 0
    %v303 = vcvt.s32.f32 %v302
    %vm304 = vcmask 7168
    %v305 = vsel %vm304, %v303, 0.0
    %306 = vadd.xlane.f32.xlu0 %v305
    %v307 = vpop.xlane.xlu0 %306
    %v308 = vrot.slane %v307, 4
    %v309 = vadd.f32 %v307, %v308
    %v310 = vrot.slane %v309, 2
    %v311 = vadd.f32 %v309, %v310
    %v312 = vrot.slane %v311, 1
    %v313 = vadd.f32 %v311, %v312
    %s314 = vtos %v313
    %v315 = vrcp.pop 8.0
    %s316 = vtos %v315
    %s317 = smul.f32 %s314, %s316
    %s318 = scalar_lea.smem [#allocation5], 1
    %319 = sst [smem:[%s318]] %s317
    // Predicated region
    $region22: #{forward.1} parent=1 // pred_check
      _
    $region23: #{forward.1} parent=1 // pred_check_branch
      %321 = sbr.rel (0) target = $region25
    $region24: #{forward.1} parent=1 // pred_region
      _
    $region25: #{forward.1} parent=1 // pred_fallthru
      _
    // Predicated region
    $region26: #{forward.1} parent=1 // pred_check
      _
    $region27: #{forward.1} parent=1 // pred_check_branch
      %323 = sbr.rel (0) target = $region29
    $region28: #{forward.1} parent=1 // pred_region
      %s325 = ssub.s32 16, 16
      %326 = vsyncadd [#allocation4], %s325
      %s328 = sshll.u32 %s5, 4
      %s329 = int_to_ptr.vmem [resolvable:$true] %s328
      %331 = dma.smem_to_vmem [#allocation5], 16, %s329, [#allocation4]
    $region29: #{forward.1} parent=1 // pred_fallthru
      _
    // Predicated region
    $region30: #{forward.1} parent=1 // pred_check
      _
    $region31: #{forward.1} parent=1 // pred_check_branch
      %333 = sbr.rel (0) target = $region33
    $region32: #{forward.1} parent=1 // pred_region
      _
    $region33: #{forward.1} parent=1 // pred_fallthru
      _
    // Predicated region
    $region34: #{forward.1} parent=1 // pred_check
      _
    $region35: #{forward.1} parent=1 // pred_check_branch
      %335 = sbr.rel (0) target = $region37
    $region36: #{forward.1} parent=1 // pred_region
      %336 = dma.done [#allocation4], 16
    $region37: #{forward.1} parent=1 // pred_fallthru
      _
    %337 = sfence
    %338 = vsyncpa [#allocation3], 1
    %339 = vsyncpa [#allocation4], 1

</llo_original>
